<compile_context>
chip_gen: v5e
topology: v5e:2x2
jax: 0.10.0
libtpu: 0.0.40
codegen_flags: <defaults>
</compile_context>

<pallas_src>
import math

import jax
import jax.numpy as jnp
from jax import lax
from jax.experimental import pallas as pl
from jax.experimental.pallas import tpu as pltpu


def _num_tensorcores():
    """Best-effort TensorCores-per-chip; only used to decide whether splitting the
    leading 'parallel' grid axis in two is worthwhile.  Misdetection is harmless
    for correctness (it only adds/removes a tiny epilogue)."""
    try:
        kind = jax.devices()[0].device_kind.lower()
    except Exception:
        return 1
    # Megacore chips expose 2 TensorCores behind one device.
    if "v4" in kind or "v5p" in kind or "v7" in kind:
        return 2
    return 1


def _choose_layout(B, F, target_block_bytes, max_width):
    """Pick (W, P, nb): lane width W | F, rows-per-batch-item P = F // W, and nb
    batch items per streaming block so each streaming input block is roughly
    target_block_bytes and (when possible) its row count is a multiple of 8."""
    assert F % 128 == 0
    assert max_width >= 128
    widths = [w for w in range(128, min(F, max_width) + 1, 128) if F % w == 0]
    W = widths[0]                       # fallback: narrowest width -> most rows
    for w in sorted(widths, reverse=True):
        if (B * F) // w >= 8:           # keep >= 8 total rows -> full sublanes
            W = w
            break
    P = F // W
    per_item_bytes = F * 4              # f32
    nb = max(1, min(B, int(target_block_bytes) // per_item_bytes))
    while B % nb != 0:                  # block count must cover B exactly
        nb -= 1
    if (nb * P) % 8 != 0:
        fixed = None
        for d in range(nb, B + 1):
            if B % d == 0 and (d * P) % 8 == 0:
                fixed = d
                break
        # If nothing works, fall back to a single block over everything; the wrapper
        # will zero-pad rows up to a multiple of 8.
        nb = fixed if fixed is not None else B
    return W, P, nb


def _make_kernel(R, W, L):
    """Kernel for streaming blocks of shape (R, W); prior tile has L rows (L | prior
    period alignment, L % 8 == 0)."""
    assert R % 8 == 0 and W % 128 == 0 and L % 8 == 0
    n_slabs = R // 8
    n_chunks = W // 128
    STATIC_SLAB_LIMIT = 4
    FORI_UNROLL = 4

    def bwl_kernel(out_ref, prior_ref, tgt_ref, psum_ref, acc_ref):
        j = pl.program_id(1)

        @pl.when(j == 0)
        def _init():
            acc_ref[...] = jnp.zeros_like(acc_ref)

        # The prior repeats every L rows; when L == 8 a single slab covers it and is
        # kept resident in vregs for the whole block.
        prior_full = prior_ref[...] if L == 8 else None

        def slab_partial(i):
            # i is a Python int on the static path, a traced int inside fori_loop.
            row0 = i * 8
            if not isinstance(i, int):
                row0 = pl.multiple_of(row0, 8)
            if prior_full is not None:
                p_slab = prior_full
            else:
                pr0 = (i * 8) % L
                if not isinstance(i, int):
                    pr0 = pl.multiple_of(pr0, 8)
                p_slab = prior_ref[pl.ds(pr0, 8), :]
            d = out_ref[pl.ds(row0, 8), :] * p_slab - tgt_ref[pl.ds(row0, 8), :]
            sq = d * d
            # Fold W lanes down to one (8,128) vreg with plain VPU adds so the
            # running accumulator stays a single vreg-sized tile.
            if n_chunks == 1:
                return sq
            folded = sq[:, 0:128]
            for c in range(1, n_chunks):
                folded = folded + sq[:, c * 128:(c + 1) * 128]
            return folded

        if n_slabs <= STATIC_SLAB_LIMIT:
            partial = slab_partial(0)
            for i in range(1, n_slabs):
                partial = partial + slab_partial(i)
        else:
            partial = lax.fori_loop(
                0, n_slabs,
                lambda i, carry: carry + slab_partial(i),
                jnp.zeros((8, 128), jnp.float32),
                unroll=min(FORI_UNROLL, n_slabs))

        acc_ref[...] += partial

        @pl.when(j == pl.num_programs(1) - 1)
        def _finalize():
            psum_ref[...] = acc_ref[...]

    return bwl_kernel


def bayesian_weighted_mse_loss(output, prior, target, *,
                               target_block_bytes=4 << 20, max_width=512):
    """output: (B, F) f32, prior: (F,) f32, target: (B, F) f32 -> scalar f32 loss."""
    B, F = output.shape
    assert target.shape == (B, F)
    assert prior.shape == (F,)
    n_elems = B * F                     # denominator of the mean (original size)

    # Pad features to a lane multiple; padded columns are zero in output, target and
    # prior, so they contribute exactly 0 to the sum of squares.
    F_pad = ((F + 127) // 128) * 128
    if F_pad != F:
        pad_f = F_pad - F
        output = jnp.pad(output, ((0, 0), (0, pad_f)))
        target = jnp.pad(target, ((0, 0), (0, pad_f)))
        prior = jnp.pad(prior, ((0, pad_f),))

    W, P, nb = _choose_layout(B, F_pad, target_block_bytes, max_width)
    R = nb * P                          # rows per streaming block (whole batch items)
    rows_total = B * P

    out2 = output.reshape(rows_total, W)
    tgt2 = target.reshape(rows_total, W)

    # If the single full-array block is not sublane aligned, zero-pad rows; padded
    # rows contribute (0*prior - 0)^2 = 0 regardless of which prior row they hit.
    if R % 8 != 0:
        assert nb == B                  # only reachable via the single-block fallback
        R_pad = ((R + 7) // 8) * 8
        out2 = jnp.pad(out2, ((0, R_pad - rows_total), (0, 0)))
        tgt2 = jnp.pad(tgt2, ((0, R_pad - rows_total), (0, 0)))
        R = R_pad
        rows_total = R_pad

    n_blocks = rows_total // R

    # Prior tiled to only L = lcm(P, 8) rows (decoupled from the block size); the
    # kernel indexes it with (slab_row % L).
    L = math.lcm(P, 8)
    prior_block = jnp.tile(prior.reshape(P, W), (L // P, 1))      # (L, W)

    # Split the leading grid axis only when there is a second TensorCore to feed.
    n_cores = _num_tensorcores()
    num_par = 2 if (n_cores >= 2 and n_blocks >= 2 and n_blocks % 2 == 0) else 1
    steps = n_blocks // num_par

    kernel = _make_kernel(R, W, L)
    data_index = lambda p, j: (p * steps + j, 0)
    data_spec_out = pl.BlockSpec((R, W), data_index)
    data_spec_tgt = pl.BlockSpec((R, W), data_index)
    prior_spec = pl.BlockSpec((L, W), lambda p, j: (0, 0))        # resident, DMA'd once

    # VMEM budget: 2 streaming inputs x 2 buffers x block, small prior tile, tiny
    # accumulator/output tiles, plus headroom.  Cap at 48 MiB (fits v7x's 64 MiB/TC),
    # floor at 16 MiB (covers v5e's small scoped default).
    stream_bytes = 2 * 2 * R * W * 4
    prior_bytes = 2 * L * W * 4
    misc_bytes = 4 * (8 * 128 * 4)
    vmem_limit = int(min(48 << 20,
                         max(16 << 20, (stream_bytes + prior_bytes + misc_bytes) * 3 // 2)))

    cost = pl.CostEstimate(
        flops=4 * rows_total * W,
        transcendentals=0,
        bytes_accessed=2 * 4 * rows_total * W + 4 * L * W + 4 * num_par * 8 * 128,
    )

    partials = pl.pallas_call(
        kernel,
        out_shape=jax.ShapeDtypeStruct((num_par * 8, 128), jnp.float32),
        grid_spec=pltpu.PrefetchScalarGridSpec(
            num_scalar_prefetch=0,
            grid=(num_par, steps),
            in_specs=[data_spec_out, prior_spec, data_spec_tgt],
            out_specs=pl.BlockSpec((8, 128), lambda p, j: (p, 0)),
            scratch_shapes=[pltpu.VMEM((8, 128), jnp.float32)],
        ),
        compiler_params=pltpu.CompilerParams(
            dimension_semantics=("parallel", "arbitrary"),
            vmem_limit_bytes=vmem_limit,
        ),
        cost_estimate=cost,
    )(out2, prior_block, tgt2)

    # Tiny final reduction (<= 2 * 8 * 128 f32 values) done in plain JAX.
    total = jnp.sum(partials)
    return total / n_elems


if __name__ == "__main__":
    key = jax.random.PRNGKey(0)

    def check(shape, case_key, **kwargs):
        B = shape[0]
        F = math.prod(shape[1:])
        k1, k2, k3 = jax.random.split(case_key, 3)
        output = jax.random.normal(k1, shape, dtype=jnp.float32)
        target = jax.random.normal(k2, shape, dtype=jnp.float32)
        prior = jax.random.uniform(k3, shape[1:], dtype=jnp.float32)  # anat prior in [0,1]

        loss = bayesian_weighted_mse_loss(
            output.reshape(B, F), prior.reshape(F), target.reshape(B, F), **kwargs)
        loss = jax.block_until_ready(loss)

        # Pure-JAX reference (same math as the PyTorch module with type='mse').
        ref = jnp.mean((output * prior[None] - target) ** 2)
        assert jnp.allclose(loss, ref, rtol=1e-5, atol=1e-6), (shape, loss, ref)

    # Primary case from the module: batch=2, channels=4, spatial 16x16.
    check((2, 4, 16, 16), key)
    # Multi-step grid + fori_loop slab path (small blocks forced to exercise tiling).
    check((12, 4, 32, 32), jax.random.fold_in(key, 1), target_block_bytes=96 * 1024)
    # Odd rows-per-item: row padding and L != 8 prior tiling.
    check((3, 6, 8, 8), jax.random.fold_in(key, 2))
    # Feature count not a multiple of 128: feature-padding path.
    check((2, 4, 5, 10), jax.random.fold_in(key, 3))

    print("KERNEL_OK")
</pallas_src>

<mosaic_0001>
module attributes {stable_mosaic.version = 11 : i64} {
  func.func @bwl_kernel(%arg0: i32, %arg1: i32, %arg2: memref<8x256xf32, #tpu.memory_space<vmem>>, %arg3: memref<8x256xf32, #tpu.memory_space<vmem>>, %arg4: memref<8x256xf32, #tpu.memory_space<vmem>>, %arg5: memref<8x128xf32, #tpu.memory_space<vmem>>, %arg6: memref<8x128xf32, #tpu.memory_space<vmem>>) attributes {dimension_semantics = [#tpu.dimension_semantics<parallel>, #tpu.dimension_semantics<arbitrary>], iteration_bounds = array<i64: 1, 1>, scalar_prefetch = 0 : i64, scratch_operands = 1 : i64, tpu.core_type = #tpu.core_type<tc>, window_params = [{transform_indices = @transform_0, window_bounds = array<i64: 8, 256>}, {pipeline_mode = #tpu.pipeline_mode<synchronous>, transform_indices = @transform_1, window_bounds = array<i64: 8, 256>}, {transform_indices = @transform_2, window_bounds = array<i64: 8, 256>}, {transform_indices = @transform_3, window_bounds = array<i64: 8, 128>}]} {
    %c0_i32 = arith.constant 0 : i32
    %0 = arith.cmpi eq, %arg1, %c0_i32 : i32
    %1 = arith.extui %0 : i1 to i32
    %c0_i32_0 = arith.constant 0 : i32
    %2 = arith.cmpi ne, %1, %c0_i32_0 : i32
    scf.if %2 {
      %cst = arith.constant 0.000000e+00 : f32
      %18 = vector.broadcast %cst : f32 to vector<8x128xf32>
      %c0_12 = arith.constant 0 : index
      %c0_13 = arith.constant 0 : index
      %19 = vector.load %arg6[%c0_12, %c0_13] : memref<8x128xf32, #tpu.memory_space<vmem>>, vector<8x128xf32>
      tpu.vector_store %arg6[%c0_12, %c0_13], %18 {strides = array<i32>} : memref<8x128xf32, #tpu.memory_space<vmem>>, vector<8x128xf32>,
    } else {
    }
    %c0 = arith.constant 0 : index
    %c0_1 = arith.constant 0 : index
    %3 = vector.load %arg3[%c0, %c0_1] : memref<8x256xf32, #tpu.memory_space<vmem>>, vector<8x256xf32>
    %c0_2 = arith.constant 0 : index
    %c0_3 = arith.constant 0 : index
    %4 = vector.load %arg2[%c0_2, %c0_3] : memref<8x256xf32, #tpu.memory_space<vmem>>, vector<8x256xf32>
    %5 = arith.mulf %4, %3 : vector<8x256xf32>
    %c0_4 = arith.constant 0 : index
    %c0_5 = arith.constant 0 : index
    %6 = vector.load %arg4[%c0_4, %c0_5] : memref<8x256xf32, #tpu.memory_space<vmem>>, vector<8x256xf32>
    %7 = arith.subf %5, %6 : vector<8x256xf32>
    %8 = arith.mulf %7, %7 : vector<8x256xf32>
    %9 = vector.extract_strided_slice %8 {offsets = [0, 0], sizes = [8, 128], strides = [1, 1]} : vector<8x256xf32> to vector<8x128xf32>
    %10 = vector.extract_strided_slice %8 {offsets = [0, 128], sizes = [8, 128], strides = [1, 1]} : vector<8x256xf32> to vector<8x128xf32>
    %11 = arith.addf %9, %10 : vector<8x128xf32>
    %c0_6 = arith.constant 0 : index
    %c0_7 = arith.constant 0 : index
    %12 = vector.load %arg6[%c0_6, %c0_7] : memref<8x128xf32, #tpu.memory_space<vmem>>, vector<8x128xf32>
    %13 = arith.addf %12, %11 : vector<8x128xf32>
    %c0_8 = arith.constant 0 : index
    %c0_9 = arith.constant 0 : index
    %14 = vector.load %arg6[%c0_8, %c0_9] : memref<8x128xf32, #tpu.memory_space<vmem>>, vector<8x128xf32>
    tpu.vector_store %arg6[%c0_8, %c0_9], %13 {strides = array<i32>} : memref<8x128xf32, #tpu.memory_space<vmem>>, vector<8x128xf32>,
    %c0_i32_10 = arith.constant 0 : i32
    %15 = arith.cmpi eq, %arg1, %c0_i32_10 : i32
    %16 = arith.extui %15 : i1 to i32
    %c0_i32_11 = arith.constant 0 : i32
    %17 = arith.cmpi ne, %16, %c0_i32_11 : i32
    scf.if %17 {
      %c0_12 = arith.constant 0 : index
      %c0_13 = arith.constant 0 : index
      %18 = vector.load %arg6[%c0_12, %c0_13] : memref<8x128xf32, #tpu.memory_space<vmem>>, vector<8x128xf32>
      %c0_14 = arith.constant 0 : index
      %c0_15 = arith.constant 0 : index
      %19 = vector.load %arg5[%c0_14, %c0_15] : memref<8x128xf32, #tpu.memory_space<vmem>>, vector<8x128xf32>
      tpu.vector_store %arg5[%c0_14, %c0_15], %18 {strides = array<i32>} : memref<8x128xf32, #tpu.memory_space<vmem>>, vector<8x128xf32>,
    } else {
    }
    return
  }
  func.func @transform_0(%arg0: i32, %arg1: i32) -> (i32, i32) {
    %c1_i32 = arith.constant 1 : i32
    %0 = arith.muli %arg0, %c1_i32 : i32
    %1 = arith.addi %0, %arg1 : i32
    %c0_i32 = arith.constant 0 : i32
    %c0_i32_0 = arith.constant 0 : i32
    return %1, %c0_i32 : i32, i32
  }
  func.func @transform_1(%arg0: i32, %arg1: i32) -> (i32, i32) {
    %c0_i32 = arith.constant 0 : i32
    %c0_i32_0 = arith.constant 0 : i32
    %c0_i32_1 = arith.constant 0 : i32
    return %c0_i32, %c0_i32_0 : i32, i32
  }
  func.func @transform_2(%arg0: i32, %arg1: i32) -> (i32, i32) {
    %c1_i32 = arith.constant 1 : i32
    %0 = arith.muli %arg0, %c1_i32 : i32
    %1 = arith.addi %0, %arg1 : i32
    %c0_i32 = arith.constant 0 : i32
    %c0_i32_0 = arith.constant 0 : i32
    return %1, %c0_i32 : i32, i32
  }
  func.func @transform_3(%arg0: i32, %arg1: i32) -> (i32, i32) {
    %c0_i32 = arith.constant 0 : i32
    %c0_i32_0 = arith.constant 0 : i32
    return %arg0, %c0_i32 : i32, i32
  }
}

</mosaic_0001>

<llo_original>
// kernel: tpu_custom_call.1
$region0: #{tpu_custom_call.1}
  #allocation0 [shape = 'u32[]', space=smem, size = 0x4, offset = 0x4, fixed_abs, tag = 'smem constant byte address 0x4 - core index']
  #allocation1 [shape = 'u32[72,128]{1,0:T(1,128)}', space=vmem, size = 0x9000, scoped, tag = 'internal scratch']
  #allocation2 [shape = 'f32[8,128]{1,0:T(8,128)}', space=vmem, size = 0x1000, scoped, tag = 'scratch operand']
  %s0 = inlined_call_operand.hbm [shape: f32[8,256], index: 0, kind: input, shape index: {}]
  %s1 = inlined_call_operand.hbm [shape: f32[8,256], index: 1, kind: input, shape index: {}]
  %s2 = inlined_call_operand.hbm [shape: f32[8,256], index: 2, kind: input, shape index: {}]
  %s3 = inlined_call_operand.hbm [shape: f32[8,128], index: 3, kind: output, shape index: {}]
  %s4 = sld [smem:[#allocation0]]
  $region42: #{tpu_custom_call.1} parent=0
    _
  %s6 = ssub.s32 1, %s4
  %s7 = scalar_select 0, %s6, %s4
  $region1: #{tpu_custom_call.1} parent=0
    #allocation3 [shape = 'u8[8192]{0}', space=vmem, size = 0x2000, scoped, tag = 'input window, operand 0, single buffered']
    #allocation4 [shape = 's32[1]{0}', space=sflag, size = 0x4, scoped, tag = 'scoped memory for tpu_custom_call.1']
    #allocation5 [shape = 's32[1]{0}', space=sflag, size = 0x4, scoped, tag = 'scoped memory for tpu_custom_call.1']
    #allocation6 [shape = 'u8[8192]{0}', space=vmem, size = 0x2000, scoped, tag = 'input window, operand 1, single buffered']
    #allocation7 [shape = 's32[1]{0}', space=sflag, size = 0x4, scoped, tag = 'scoped memory for tpu_custom_call.1']
    #allocation8 [shape = 'u8[8192]{0}', space=vmem, size = 0x2000, scoped, tag = 'input window, operand 2, single buffered']
    #allocation9 [shape = 'u8[4096]{0}', space=vmem, size = 0x1000, scoped, tag = 'output window, operand 0, single buffered']
    %8 = vsyncpa [#allocation4], 0
    %9 = vsyncpa [#allocation7], 0
    %10 = vsyncpa [#allocation5], 0
    // Predicated region
    $region2: #{tpu_custom_call.1} parent=1 // pred_check
      _
    $region3: #{tpu_custom_call.1} parent=1 // pred_check_branch
      %12 = sbr.rel (0) target = $region5
    $region4: #{tpu_custom_call.1} parent=1 // pred_region
      %s13 = sadd.s32 0, 0
      %15 = vsyncadd [#allocation4], 0
      %s16 = smul.addr %s13, 2
      %s17 = smul.addr %s16, 8
      %s18 = scalar_lea.hbm %s0, %s17
      %s20 = sshll.u32 %s18, 4
      %s21 = int_to_ptr.hbm [resolvable:$true] %s20
      %s22 = sshll.u32 [#allocation3], 4
      %s23 = int_to_ptr.vmem [resolvable:$true] %s22
      %25 = dma.hbm_to_vmem [thread:$0]  %s21, 256, %s23, [#allocation4]
    $region5: #{tpu_custom_call.1} parent=1 // pred_fallthru
      _
    // Predicated region
    $region6: #{tpu_custom_call.1} parent=1 // pred_check
      _
    $region7: #{tpu_custom_call.1} parent=1 // pred_check_branch
      %27 = sbr.rel (0) target = $region9
    $region8: #{tpu_custom_call.1} parent=1 // pred_region
      %29 = vsyncadd [#allocation7], 0
      %s31 = sshll.u32 %s1, 4
      %s32 = int_to_ptr.hbm [resolvable:$true] %s31
      %s33 = sshll.u32 [#allocation6], 4
      %s34 = int_to_ptr.vmem [resolvable:$true] %s33
      %36 = dma.hbm_to_vmem [thread:$0]  %s32, 256, %s34, [#allocation7]
    $region9: #{tpu_custom_call.1} parent=1 // pred_fallthru
      _
    // Predicated region
    $region10: #{tpu_custom_call.1} parent=1 // pred_check
      _
    $region11: #{tpu_custom_call.1} parent=1 // pred_check_branch
      %38 = sbr.rel (0) target = $region13
    $region12: #{tpu_custom_call.1} parent=1 // pred_region
      %s39 = sadd.s32 0, 0
      %41 = vsyncadd [#allocation7], 0
      %s42 = smul.addr %s39, 2
      %s43 = smul.addr %s42, 8
      %s44 = scalar_lea.hbm %s2, %s43
      %s46 = sshll.u32 %s44, 4
      %s47 = int_to_ptr.hbm [resolvable:$true] %s46
      %s48 = sshll.u32 [#allocation8], 4
      %s49 = int_to_ptr.vmem [resolvable:$true] %s48
      %51 = dma.hbm_to_vmem [thread:$0]  %s47, 256, %s49, [#allocation7]
    $region13: #{tpu_custom_call.1} parent=1 // pred_fallthru
      _
    // Predicated region
    $region14: #{tpu_custom_call.1} parent=1 // pred_check
      _
    $region15: #{tpu_custom_call.1} parent=1 // pred_check_branch
      %53 = sbr.rel (0) target = $region17
    $region16: #{tpu_custom_call.1} parent=1 // pred_region
      %55 = dma.done [#allocation4], 256
    $region17: #{tpu_custom_call.1} parent=1 // pred_fallthru
      _
    // Predicated region
    $region18: #{tpu_custom_call.1} parent=1 // pred_check
      _
    $region19: #{tpu_custom_call.1} parent=1 // pred_check_branch
      %57 = sbr.rel (0) target = $region21
    $region20: #{tpu_custom_call.1} parent=1 // pred_region
      %59 = dma.done [#allocation7], 256
    $region21: #{tpu_custom_call.1} parent=1 // pred_fallthru
      _
    // Predicated region
    $region22: #{tpu_custom_call.1} parent=1 // pred_check
      _
    $region23: #{tpu_custom_call.1} parent=1 // pred_check_branch
      %61 = sbr.rel (0) target = $region25
    $region24: #{tpu_custom_call.1} parent=1 // pred_region
      %63 = dma.done [#allocation7], 256
    $region25: #{tpu_custom_call.1} parent=1 // pred_fallthru
      _
    %s64 = sadd.s32 0, 0
    %s65 = sadd.s32 0, 0
    %p66 = scmp.eq.s32.totalorder 0, 0
    // Predicated region
    $region26: #{tpu_custom_call.1} parent=1 // pred_check
      %p67 = pneg %p66
    $region27: #{tpu_custom_call.1} parent=1 // pred_check_branch
      %69 = sbr.rel (%p67) target = $region29
    $region28: #{tpu_custom_call.1} parent=1 // pred_region
      %70 = vst [vmem:[#allocation2] sm:$0xff] 0.0
    $region29: #{tpu_custom_call.1} parent=1 // pred_fallthru
      _
    %v71 = vld [vmem:[#allocation6] sm:$0xff]
    %v72 = vld [vmem:[#allocation6 + $0x8] sm:$0xff]
    %v73 = vld [vmem:[#allocation3] sm:$0xff]
    %v74 = vld [vmem:[#allocation3 + $0x8] sm:$0xff]
    %v75 = vmul.f32 %v73, %v71
    %v76 = vmul.f32 %v74, %v72
    %v77 = vld [vmem:[#allocation8] sm:$0xff]
    %v78 = vld [vmem:[#allocation8 + $0x8] sm:$0xff]
    %v79 = vsub.f32 %v75, %v77
    %v80 = vsub.f32 %v76, %v78
    %v81 = vmul.f32 %v79, %v79
    %v82 = vmul.f32 %v80, %v80
    %v83 = vadd.f32 %v81, %v82
    %v84 = vld [vmem:[#allocation2] sm:$0xff]
    %v85 = vadd.f32 %v84, %v83
    %86 = vst [vmem:[#allocation2] sm:$0xff] %v85
    // Predicated region
    $region30: #{tpu_custom_call.1} parent=1 // pred_check
      %p87 = pneg %p66
    $region31: #{tpu_custom_call.1} parent=1 // pred_check_branch
      %89 = sbr.rel (%p87) target = $region33
    $region32: #{tpu_custom_call.1} parent=1 // pred_region
      %v90 = vld [vmem:[#allocation2] sm:$0xff]
      %91 = vst [vmem:[#allocation9] sm:$0xff] %v90
    $region33: #{tpu_custom_call.1} parent=1 // pred_fallthru
      _
    // Predicated region
    $region34: #{tpu_custom_call.1} parent=1 // pred_check
      _
    $region35: #{tpu_custom_call.1} parent=1 // pred_check_branch
      %93 = sbr.rel (0) target = $region37
    $region36: #{tpu_custom_call.1} parent=1 // pred_region
      %95 = vsyncadd [#allocation5], 0
      %s97 = sshll.u32 [#allocation9], 4
      %s98 = int_to_ptr.vmem [resolvable:$true] %s97
      %s99 = sshll.u32 %s3, 4
      %s100 = int_to_ptr.hbm [resolvable:$true] %s99
      %102 = dma.vmem_to_hbm [thread:$0]  %s98, 128, %s100, [#allocation5]
    $region37: #{tpu_custom_call.1} parent=1 // pred_fallthru
      _
    // Predicated region
    $region38: #{tpu_custom_call.1} parent=1 // pred_check
      _
    $region39: #{tpu_custom_call.1} parent=1 // pred_check_branch
      %104 = sbr.rel (0) target = $region41
    $region40: #{tpu_custom_call.1} parent=1 // pred_region
      %106 = dma.done [#allocation5], 128
    $region41: #{tpu_custom_call.1} parent=1 // pred_fallthru
      _
    %107 = vsyncpa [#allocation4], 1
    %108 = vsyncpa [#allocation7], 1
    %109 = vsyncpa [#allocation5], 1

</llo_original>
